<compile_context>
chip_gen: v7x
topology: tpu7x:2x2x1
jax: 0.10.0
libtpu: 0.0.40
codegen_flags: <defaults>
</compile_context>

<pallas_src>
import jax
import jax.numpy as jnp
from jax import lax
from jax.experimental import pallas as pl
from jax.experimental.pallas import tpu as pltpu

N_EMBD = 64        # n_embd in the reference module
HEAD_SIZE = 16     # head_size passed to Head(head_size)
BLOCK_SIZE = 128   # tril buffer size in the reference (mask is generated in-kernel)


def head_kernel(x_ref, wkqv_ref, o_ref):
    BB, T, C = x_ref.shape          # batch-block, seq, embed
    H = wkqv_ref.shape[1] // 3      # head size

    # Fused K/Q/V projection on the flattened (BB*T, C) slab: one MXU matmul with a
    # large M.  Kept in f32 for accuracy; the attention matmuls below run in bf16.
    x2d = x_ref[...].reshape(BB * T, C)
    kqv = jnp.dot(x2d, wkqv_ref[...], preferred_element_type=jnp.float32)  # (BB*T, 3H)
    kqv = kqv.reshape(BB, T, 3 * H)

    # Fold the module's C**-0.5 scale into q (BB*T*H mults instead of BB*T*T).
    k = kqv[:, :, 0:H].astype(jnp.bfloat16)                       # (BB, T, H)
    q = (kqv[:, :, H:2 * H] * (C ** -0.5)).astype(jnp.bfloat16)   # (BB, T, H)
    v = kqv[:, :, 2 * H:3 * H].astype(jnp.bfloat16)               # (BB, T, H)

    # Batched scores (BB, T, T): bf16 operands, f32 accumulation; no materialized k^T.
    s = lax.dot_general(q, k,
                        dimension_numbers=(((2,), (2,)), ((0,), (0,))),
                        preferred_element_type=jnp.float32)

    # Causal mask == masked_fill(tril[:T, :T] == 0, -inf): one 2D compare, broadcast.
    row = lax.broadcasted_iota(jnp.int32, (T, T), 0)
    col = lax.broadcasted_iota(jnp.int32, (T, T), 1)
    s = jnp.where((col <= row)[None, :, :], s, -jnp.inf)

    # Numerically stable softmax numerator; normalization is applied after the value
    # matmul (BB*T*H mults instead of BB*T*T).
    m = jnp.max(s, axis=-1, keepdims=True)
    p = jnp.exp(s - m)
    denom = jnp.sum(p, axis=-1, keepdims=True)

    # TODO(synk): nn.Dropout(p=0.2) is identity in eval mode; training-mode stochastic
    # dropout (pltpu PRNG + stateful_bernoulli) is not applied here.

    # Value mix directly in (BB, T, H) layout — no post-kernel transpose pass.
    out = lax.dot_general(p.astype(jnp.bfloat16), v,
                          dimension_numbers=(((2,), (1,)), ((0,), (0,))),
                          preferred_element_type=jnp.float32)     # (BB, T, H)
    o_ref[...] = out * pl.reciprocal(denom, approx=True)


def _pick_block_b(batch, seq, embed, head, *,
                  target_tokens=2048, vmem_budget=20 * 1024 * 1024):
    """Batch rows per grid step: ~target_tokens of work, VMEM-bounded, >= 2 grid steps."""
    bb = max(1, target_tokens // max(seq, 1))

    def fits(b):
        # ~3 live f32 (BB,T,T) score/prob copies + double-buffered x/out + kqv, in bytes.
        return (3 * b * seq * seq * 4
                + 2 * b * seq * embed * 4
                + b * seq * 3 * head * 4
                + 2 * b * seq * head * 4) <= vmem_budget

    while bb > 1 and not fits(bb):
        bb //= 2
    if batch >= 2:
        # Keep at least 2 grid steps so both v7x TensorCores get work via "parallel".
        bb = min(bb, max(1, batch // 2))
    return max(1, min(bb, batch))


def head_forward(x, w_kqv, *, block_b=None):
    B, T, C = x.shape
    H = w_kqv.shape[1] // 3
    if block_b is None:
        block_b = _pick_block_b(B, T, C, H)

    # Pad B to a multiple of block_b (avoids the degenerate block_b=1 fallback for
    # awkward / prime B; padded rows are sliced off below).
    n_blocks = pl.cdiv(B, block_b)
    b_pad = n_blocks * block_b
    x_in = x if b_pad == B else jnp.pad(x, ((0, b_pad - B), (0, 0), (0, 0)))

    out = pl.pallas_call(
        head_kernel,
        out_shape=jax.ShapeDtypeStruct((b_pad, T, H), jnp.float32),
        grid=(n_blocks,),
        in_specs=[
            pl.BlockSpec((block_b, T, C), lambda i: (i, 0, 0)),
            pl.BlockSpec((C, 3 * H), lambda i: (0, 0)),
        ],
        out_specs=pl.BlockSpec((block_b, T, H), lambda i: (i, 0, 0)),
        compiler_params=pltpu.CompilerParams(
            dimension_semantics=("parallel",)),
    )(x_in, w_kqv)
    return out if b_pad == B else out[:B]


def head_reference(x, wk, wq, wv):
    """Pure-JAX reference matching the PyTorch forward (eval mode)."""
    B, T, C = x.shape
    k = x @ wk
    q = x @ wq
    v = x @ wv
    wei = jnp.einsum("btd,bsd->bts", q, k) * (C ** -0.5)
    mask = jnp.tril(jnp.ones((T, T), dtype=bool))
    wei = jnp.where(mask, wei, -jnp.inf)
    wei = jax.nn.softmax(wei, axis=-1)
    return jnp.einsum("bts,bsd->btd", wei, v)


if __name__ == "__main__":
    C, H = N_EMBD, HEAD_SIZE

    key = jax.random.PRNGKey(0)
    kx, kk, kq, kv, kx2 = jax.random.split(key, 5)

    # PyTorch Linear weight is (H, C); we store the transpose (C, H) and fuse to (C, 3H).
    bound = 1.0 / (C ** 0.5)
    wk = jax.random.uniform(kk, (C, H), jnp.float32, -bound, bound)
    wq = jax.random.uniform(kq, (C, H), jnp.float32, -bound, bound)
    wv = jax.random.uniform(kv, (C, H), jnp.float32, -bound, bound)
    w_kqv = jnp.concatenate([wk, wq, wv], axis=1)   # fused (C, 3H)

    # Primary small-shape check (B=2, T=8, C=64, H=16).
    B, T = 2, 8
    x = jax.random.normal(kx, (B, T, C), dtype=jnp.float32)
    out = jax.block_until_ready(head_forward(x, w_kqv))
    ref = head_reference(x, wk, wq, wv)
    assert out.shape == (B, T, H)
    # bf16 MXU operands + EUP approx reciprocal => relaxed tolerance.
    assert jnp.allclose(out, ref, atol=1e-2, rtol=1e-2), "mismatch vs reference (small)"

    # Secondary check exercising the blocked + padded grid path (prime B, T=BLOCK_SIZE).
    B2, T2 = 7, BLOCK_SIZE
    x2 = jax.random.normal(kx2, (B2, T2, C), dtype=jnp.float32)
    out2 = jax.block_until_ready(head_forward(x2, w_kqv))
    ref2 = head_reference(x2, wk, wq, wv)
    assert out2.shape == (B2, T2, H)
    assert jnp.allclose(out2, ref2, atol=1e-2, rtol=1e-2), "mismatch vs reference (blocked)"

    print("KERNEL_OK")
</pallas_src>

<mosaic_0001>
module attributes {stable_mosaic.version = 11 : i64} {
  func.func @head_kernel(%arg0: i32, %arg1: memref<1x8x64xf32, #tpu.memory_space<vmem>>, %arg2: memref<64x48xf32, #tpu.memory_space<vmem>>, %arg3: memref<1x8x16xf32, #tpu.memory_space<vmem>>) attributes {dimension_semantics = [#tpu.dimension_semantics<parallel>], iteration_bounds = array<i64: 2>, scalar_prefetch = 0 : i64, scratch_operands = 0 : i64, tpu.core_type = #tpu.core_type<tc>, window_params = [{transform_indices = @transform_0, window_bounds = array<i64: 1, 8, 64>}, {pipeline_mode = #tpu.pipeline_mode<synchronous>, transform_indices = @transform_1, window_bounds = array<i64: 64, 48>}, {transform_indices = @transform_2, window_bounds = array<i64: 1, 8, 16>}]} {
    %c0 = arith.constant 0 : index
    %c0_0 = arith.constant 0 : index
    %c0_1 = arith.constant 0 : index
    %0 = vector.load %arg1[%c0, %c0_0, %c0_1] : memref<1x8x64xf32, #tpu.memory_space<vmem>>, vector<1x8x64xf32>
    %1 = vector.shape_cast %0 : vector<1x8x64xf32> to vector<8x64xf32>
    %c0_2 = arith.constant 0 : index
    %c0_3 = arith.constant 0 : index
    %2 = vector.load %arg2[%c0_2, %c0_3] : memref<64x48xf32, #tpu.memory_space<vmem>>, vector<64x48xf32>
    %cst = arith.constant dense<0.000000e+00> : vector<8x48xf32>
    %3 = tpu.matmul %1, %2, %cst {dimension_numbers = #tpu.dot_dimension_numbers<[1], [0], [0], [1], [0, 0, 1, 1], [], []>} : vector<8x64xf32>, vector<64x48xf32>, vector<8x48xf32> -> vector<8x48xf32>
    %4 = vector.shape_cast %3 : vector<8x48xf32> to vector<1x8x48xf32>
    %5 = vector.extract_strided_slice %4 {offsets = [0, 0, 0], sizes = [1, 8, 16], strides = [1, 1, 1]} : vector<1x8x48xf32> to vector<1x8x16xf32>
    %6 = arith.truncf %5 : vector<1x8x16xf32> to vector<1x8x16xbf16>
    %7 = vector.extract_strided_slice %4 {offsets = [0, 0, 16], sizes = [1, 8, 16], strides = [1, 1, 1]} : vector<1x8x48xf32> to vector<1x8x16xf32>
    %cst_4 = arith.constant 1.250000e-01 : f32
    %8 = vector.broadcast %cst_4 : f32 to vector<1x8x16xf32>
    %9 = arith.mulf %7, %8 : vector<1x8x16xf32>
    %10 = arith.truncf %9 : vector<1x8x16xf32> to vector<1x8x16xbf16>
    %11 = vector.extract_strided_slice %4 {offsets = [0, 0, 32], sizes = [1, 8, 16], strides = [1, 1, 1]} : vector<1x8x48xf32> to vector<1x8x16xf32>
    %12 = arith.truncf %11 : vector<1x8x16xf32> to vector<1x8x16xbf16>
    %cst_5 = arith.constant dense<0.000000e+00> : vector<1x8x8xf32>
    %13 = tpu.matmul %10, %6, %cst_5 {dimension_numbers = #tpu.dot_dimension_numbers<[2], [2], [1], [1], [0, 0, 0, 1, 1, 1], [0], [0]>} : vector<1x8x16xbf16>, vector<1x8x16xbf16>, vector<1x8x8xf32> -> vector<1x8x8xf32>
    %14 = tpu.iota {dimensions = array<i32: 0>} : vector<8x8xi32>
    %15 = tpu.iota {dimensions = array<i32: 1>} : vector<8x8xi32>
    %16 = arith.cmpi sle, %15, %14 : vector<8x8xi32>
    %17 = vector.shape_cast %16 : vector<8x8xi1> to vector<1x8x8xi1>
    %cst_6 = arith.constant 0xFF800000 : f32
    %18 = vector.broadcast %cst_6 : f32 to vector<1x8x8xf32>
    %19 = arith.select %17, %13, %18 : vector<1x8x8xi1>, vector<1x8x8xf32>
    %cst_7 = arith.constant dense<0xFF800000> : vector<1x8xf32>
    %20 = vector.multi_reduction <maximumf>, %19, %cst_7 [2] : vector<1x8x8xf32> to vector<1x8xf32>
    %21 = vector.shape_cast %20 : vector<1x8xf32> to vector<1x8x1xf32>
    %22 = vector.broadcast %21 : vector<1x8x1xf32> to vector<1x8x8xf32>
    %23 = arith.subf %19, %22 : vector<1x8x8xf32>
    %24 = math.exp %23 : vector<1x8x8xf32>
    %cst_8 = arith.constant dense<0.000000e+00> : vector<1x8xf32>
    %25 = vector.multi_reduction <add>, %24, %cst_8 [2] : vector<1x8x8xf32> to vector<1x8xf32>
    %26 = vector.shape_cast %25 : vector<1x8xf32> to vector<1x8x1xf32>
    %27 = arith.truncf %24 : vector<1x8x8xf32> to vector<1x8x8xbf16>
    %cst_9 = arith.constant dense<0.000000e+00> : vector<1x8x16xf32>
    %28 = tpu.matmul %27, %12, %cst_9 {dimension_numbers = #tpu.dot_dimension_numbers<[2], [1], [1], [2], [0, 0, 0, 1, 1, 2], [0], [0]>} : vector<1x8x8xbf16>, vector<1x8x16xbf16>, vector<1x8x16xf32> -> vector<1x8x16xf32>
    %29 = tpu.reciprocal %26 {approx = true} : vector<1x8x1xf32> -> vector<1x8x1xf32>
    %30 = vector.broadcast %29 : vector<1x8x1xf32> to vector<1x8x16xf32>
    %31 = arith.mulf %28, %30 : vector<1x8x16xf32>
    %c0_10 = arith.constant 0 : index
    %c0_11 = arith.constant 0 : index
    %c0_12 = arith.constant 0 : index
    %32 = vector.load %arg3[%c0_10, %c0_11, %c0_12] : memref<1x8x16xf32, #tpu.memory_space<vmem>>, vector<1x8x16xf32>
    tpu.vector_store %arg3[%c0_10, %c0_11, %c0_12], %31 {strides = array<i32>} : memref<1x8x16xf32, #tpu.memory_space<vmem>>, vector<1x8x16xf32>,
    return
  }
  func.func @transform_0(%arg0: i32) -> (i32, i32, i32) {
    %c0_i32 = arith.constant 0 : i32
    %c0_i32_0 = arith.constant 0 : i32
    %c0_i32_1 = arith.constant 0 : i32
    return %arg0, %c0_i32, %c0_i32_0 : i32, i32, i32
  }
  func.func @transform_1(%arg0: i32) -> (i32, i32) {
    %c0_i32 = arith.constant 0 : i32
    %c0_i32_0 = arith.constant 0 : i32
    %c0_i32_1 = arith.constant 0 : i32
    return %c0_i32, %c0_i32_0 : i32, i32
  }
  func.func @transform_2(%arg0: i32) -> (i32, i32, i32) {
    %c0_i32 = arith.constant 0 : i32
    %c0_i32_0 = arith.constant 0 : i32
    %c0_i32_1 = arith.constant 0 : i32
    return %arg0, %c0_i32, %c0_i32_0 : i32, i32, i32
  }
}

</mosaic_0001>

<llo_original>
// kernel: tpu_custom_call.1
$region0: #{tpu_custom_call.1}
  #allocation0 [shape = 'u32[]', space=smem, size = 0x4, offset = 0x4, fixed_abs, tag = 'smem constant byte address 0x4 - core index']
  #allocation1 [shape = 'u32[144,128]{1,0:T(1,128)}', space=vmem, size = 0x12000, scoped, tag = 'internal scratch']
  %s0 = inlined_call_operand.vmem [shape: f32[2,8,64], index: 0, kind: input, shape index: {}]
  %s1 = inlined_call_operand.vmem [shape: f32[64,48], index: 1, kind: input, shape index: {}]
  %s2 = inlined_call_operand.hbm [shape: f32[2,8,16], index: 2, kind: output, shape index: {}]
  %s3 = sld [smem:[#allocation0]]
  $region41: #{tpu_custom_call.1} parent=0
    _
  %s5 = ssub.s32 1, %s3
  %s6 = scalar_select 0, %s5, %s3
  $region1: #{tpu_custom_call.1} parent=0
    #allocation2 [shape = 'u8[8192]{0}', space=vmem, size = 0x2000, scoped, tag = 'output window, operand 0']
    #allocation3 [shape = 's32[2]{0}', space=sflag, size = 0x8, scoped, tag = 'scoped memory for tpu_custom_call.1']
    %7 = vsyncpa [#allocation3], 0
    %s8 = scalar_lea.sflag [#allocation3], 1
    %9 = vsyncpa %s8, 0
    loop: start=0, step=1, limit=4
    $region2: #{tpu_custom_call.1} parent=1 // loop_pre_header
      _
    $region3: #{tpu_custom_call.1} parent=1 // loop_header
      %s11 = sphi 0, %s15
      %p12 = scmp.ge.s32.totalorder %s11, 4
      %s21 = sphi 0, %s23
      %s24 = sphi 0, %s21
      %s25 = sphi 0, %s24
      %s41 = sphi 0, %s25
      %s45 = sphi 0, %s45
      %s47 = sphi 0, %s45
      %s48 = sphi 0, %s47
      %s62 = sphi 0, %s48
      %s68 = sphi 0, %s70
      %s71 = sphi 0, %s68
      %s72 = sphi 0, %s71
      %s88 = sphi 0, %s72
    $region4: #{tpu_custom_call.1} parent=1 // loop_header_branch
      %14 = sbr.rel (%p12) target = $region8
    $region5: #{tpu_custom_call.1} parent=1 // loop_body
      %s16 = ssub.s32 %s11, 1
      %s17 = ssub.s32 %s11, 2
      %s18 = sadd.s32 %s11, 1
      %s19 = ssub.s32 %s11, %s18
      %p20 = scmp.eq.s32.totalorder %s19, 0
      %s22 = sadd.s32 %s21, 1
      %s23 = scalar_select %p20, %s21, %s22
      %p26 = pneg %p20
      %p27 = scmp.eq.s32.totalorder %s11, 1
      %p28 = por %p26, %p27
      %p29 = scmp.ne.s32.totalorder %s21, %s24
      %p30 = scmp.eq.s32.totalorder %s11, 0
      %p31 = por %p29, %p30
      %p32 = scmp.ne.s32.totalorder %s21, %s24
      %p33 = scmp.eq.s32.totalorder %s16, 1
      %p34 = por %p32, %p33
      %p35 = scmp.ne.s32.totalorder %s24, %s25
      %p36 = scmp.eq.s32.totalorder %s16, 0
      %p37 = por %p35, %p36
      %p38 = scmp.ne.s32.totalorder %s24, %s25
      %p39 = scmp.eq.s32.totalorder %s17, 1
      %p40 = por %p38, %p39
      %p42 = scmp.ne.s32.totalorder %s25, %s41
      %p43 = scmp.eq.s32.totalorder %s17, 0
      %p44 = por %p42, %p43
      %s46 = sadd.s32 %s45, 1
      %p49 = scmp.eq.s32.totalorder %s11, 1
      %p50 = scmp.ne.s32.totalorder %s45, %s47
      %p51 = scmp.eq.s32.totalorder %s11, 0
      %p52 = por %p50, %p51
      %p53 = scmp.ne.s32.totalorder %s45, %s47
      %p54 = scmp.eq.s32.totalorder %s16, 1
      %p55 = por %p53, %p54
      %p56 = scmp.ne.s32.totalorder %s47, %s48
      %p57 = scmp.eq.s32.totalorder %s16, 0
      %p58 = por %p56, %p57
      %p59 = scmp.ne.s32.totalorder %s47, %s48
      %p60 = scmp.eq.s32.totalorder %s17, 1
      %p61 = por %p59, %p60
      %p63 = scmp.ne.s32.totalorder %s48, %s62
      %p64 = scmp.eq.s32.totalorder %s17, 0
      %p65 = por %p63, %p64
      %s66 = ssub.s32 %s11, %s18
      %p67 = scmp.eq.s32.totalorder %s66, 0
      %s69 = sadd.s32 %s68, 1
      %s70 = scalar_select %p67, %s68, %s69
      %p73 = pneg %p67
      %p74 = scmp.eq.s32.totalorder %s11, 1
      %p75 = por %p73, %p74
      %p76 = scmp.ne.s32.totalorder %s68, %s71
      %p77 = scmp.eq.s32.totalorder %s11, 0
      %p78 = por %p76, %p77
      %p79 = scmp.ne.s32.totalorder %s68, %s71
      %p80 = scmp.eq.s32.totalorder %s16, 1
      %p81 = por %p79, %p80
      %p82 = scmp.ne.s32.totalorder %s71, %s72
      %p83 = scmp.eq.s32.totalorder %s16, 0
      %p84 = por %p82, %p83
      %p85 = scmp.ne.s32.totalorder %s71, %s72
      %p86 = scmp.eq.s32.totalorder %s17, 1
      %p87 = por %p85, %p86
      %p89 = scmp.ne.s32.totalorder %s72, %s88
      %p90 = scmp.eq.s32.totalorder %s17, 0
      %p91 = por %p89, %p90
      %p92 = scmp.le.s32.totalorder 1, %s11
      %p93 = scmp.lt.s32.totalorder %s11, 3
      %p94 = pnand %p92, %p93
      %p95 = pneg %p94
      // Predicated region
      $region9: #{tpu_custom_call.1} parent=5 // pred_check
        _
      $region10: #{tpu_custom_call.1} parent=5 // pred_check_branch
        %97 = sbr.rel (%p94) target = $region12
      $region11: #{tpu_custom_call.1} parent=5 // pred_region
        %s98 = ssub.s32 %s11, 1
        // Predicated region
        $region13: #{tpu_custom_call.1} parent=11 // pred_check
          %p99 = pneg %p58
        $region14: #{tpu_custom_call.1} parent=11 // pred_check_branch
          %101 = sbr.rel (%p99) target = $region16
        $region15: #{tpu_custom_call.1} parent=11 // pred_region
          _
        $region16: #{tpu_custom_call.1} parent=11 // pred_fallthru
          _
      $region12: #{tpu_custom_call.1} parent=5 // pred_fallthru
        _
      %p102 = scmp.lt.s32.totalorder %s11, 2
      // Predicated region
      $region17: #{tpu_custom_call.1} parent=5 // pred_check
        %p103 = pneg %p102
      $region18: #{tpu_custom_call.1} parent=5 // pred_check_branch
        %105 = sbr.rel (%p103) target = $region20
      $region19: #{tpu_custom_call.1} parent=5 // pred_region
        // Predicated region
        $region21: #{tpu_custom_call.1} parent=19 // pred_check
          %p106 = pneg %p31
        $region22: #{tpu_custom_call.1} parent=19 // pred_check_branch
          %108 = sbr.rel (%p106) target = $region24
        $region23: #{tpu_custom_call.1} parent=19 // pred_region
          %p109 = scmp.lt.s32.totalorder %s11, 1
          %s110 = scalar_select %p109, %s11, 1
          %s111 = smul.addr %s110, 8
          %s112 = scalar_lea.vmem %s0, %s111
        $region24: #{tpu_custom_call.1} parent=19 // pred_fallthru
          _
      $region20: #{tpu_custom_call.1} parent=5 // pred_fallthru
        _
      %p113 = scmp.le.s32.totalorder 1, %s11
      %p114 = scmp.lt.s32.totalorder %s11, 3
      %p115 = pnand %p113, %p114
      %p116 = pneg %p115
      // Predicated region
      $region25: #{tpu_custom_call.1} parent=5 // pred_check
        _
      $region26: #{tpu_custom_call.1} parent=5 // pred_check_branch
        %118 = sbr.rel (%p115) target = $region28
      $region27: #{tpu_custom_call.1} parent=5 // pred_region
        %s119 = ssub.s32 %s11, 1
        %p120 = scmp.lt.s32.totalorder %s16, 1
        %s121 = scalar_select %p120, %s16, 1
        %s122 = smul.addr %s121, 8
        %s123 = scalar_lea.vmem %s0, %s122
        %p124 = pneg %p37
        %p125 = pneg %p34
        %p126 = pneg %p58
        %p127 = pneg %p55
        %p128 = pneg %p84
        %p129 = pneg %p81
        %s130 = sand.u32 %s71, 1
        %s131 = scalar_lea.sflag [#allocation3], %s130
        %s132 = sand.u32 %s71, 1
        %s133 = smul.addr %s132, 8
        %s134 = scalar_lea.vmem [#allocation2], %s133
        %p135 = scmp.lt.s32.totalorder %s16, 1
        %s136 = scalar_select %p135, %s16, 1
        %s137 = smul.addr %s136, 8
        %s138 = scalar_lea.vmem %s0, %s137
        %v140 = vld [vmem:[%s138] sm:$0xff]
        %v141 = vld [vmem:[%s1] sm:$0xff]
        %v142 = vld [vmem:[%s1 + $0x8] sm:$0xff]
        %v143 = vld [vmem:[%s1 + $0x10] sm:$0xff]
        %v144 = vld [vmem:[%s1 + $0x18] sm:$0xff]
        %v145 = vld [vmem:[%s1 + $0x20] sm:$0xff]
        %v146 = vld [vmem:[%s1 + $0x28] sm:$0xff]
        %v147 = vld [vmem:[%s1 + $0x30] sm:$0xff]
        %v148 = vld [vmem:[%s1 + $0x38] sm:$0xff]
        %vm149 = vcmask 523264
        %v151 = vsel %vm149, %v140, 0
        %153 = vmatprep.subr.mxu0 0.0
        %154 = vmatpush1.msra.mxu0 %v141
        %155 = vmatprep.subr.mxu0 0.0
        %156 = vmatpush1.msra.mxu0 %v142
        %157 = vmatprep.subr.mxu0 0.0
        %158 = vmatpush1.msra.mxu0 %v143
        %159 = vmatprep.subr.mxu0 0.0
        %160 = vmatpush1.msra.mxu0 %v144
        %161 = vmatprep.subr.mxu0 0.0
        %162 = vmatpush1.msra.mxu0 %v145
        %163 = vmatprep.subr.mxu0 0.0
        %164 = vmatpush1.msra.mxu0 %v146
        %165 = vmatprep.subr.mxu0 0.0
        %166 = vmatpush1.msra.mxu0 %v147
        %167 = vmatprep.subr.mxu0 0.0
        %168 = vmatpush1.msra.mxu0 %v148
        %169 = vmatprep.subr.mxu0 0.0
        %170 = vmatpush1.msra.mxu0 0.0
        %171 = vmatprep.subr.mxu0 0.0
        %172 = vmatpush1.msra.mxu0 0.0
        %173 = vmatprep.subr.mxu0 0.0
        %174 = vmatpush1.msra.mxu0 0.0
        %175 = vmatprep.subr.mxu0 0.0
        %176 = vmatpush1.msra.mxu0 0.0
        %177 = vmatprep.subr.mxu0 0.0
        %178 = vmatpush1.msra.mxu0 0.0
        %179 = vmatprep.subr.mxu0 0.0
        %180 = vmatpush1.msra.mxu0 0.0
        %181 = vmatprep.subr.mxu0 0.0
        %182 = vmatpush1.msra.mxu0 0.0
        %183 = vmatprep.subr.mxu0 0.0
        %184 = vmatpush1.msra.mxu0 0.0
        %185 = vmatprep.subr.mxu0 0.0
        %186 = vmatpush1.msra.mxu0 0.0
        %187 = vmatprep.subr.mxu0 0.0
        %188 = vmatpush1.msra.mxu0 0.0
        %189 = vmatprep.subr.mxu0 0.0
        %190 = vmatpush1.msra.mxu0 0.0
        %191 = vmatprep.subr.mxu0 0.0
        %192 = vmatpush1.msra.mxu0 0.0
        %193 = vmatprep.subr.mxu0 0.0
        %194 = vmatpush1.msra.mxu0 0.0
        %195 = vmatprep.subr.mxu0 0.0
        %196 = vmatpush1.msra.mxu0 0.0
        %197 = vmatprep.subr.mxu0 0.0
        %198 = vmatpush1.msra.mxu0 0.0
        %199 = vmatprep.subr.mxu0 0.0
        %200 = vmatpush1.msra.mxu0 0.0
        %201 = vmatprep.subr.mxu0 0.0
        %202 = vmatpush1.msra.mxu0 0.0
        %203 = vmatprep.subr.mxu0 0.0
        %204 = vmatpush1.msra.mxu0 0.0
        %205 = vmatprep.subr.mxu0 0.0
        %206 = vmatpush1.msra.mxu0 0.0
        %207 = vmatprep.subr.mxu0 0.0
        %208 = vmatpush1.msra.mxu0 0.0
        %209 = vmatprep.subr.mxu0 0.0
        %210 = vmatpush1.msra.mxu0 0.0
        %211 = vmatprep.subr.mxu0 0.0
        %212 = vmatpush1.msra.mxu0 0.0
        %213 = vmatprep.subr.mxu0 0.0
        %214 = vmatpush1.msra.mxu0 0.0
        %215 = vmatprep.subr.mxu0 0.0
        %216 = vmatpush1.msra.mxu0 0.0
        %217 = vmatprep.mubr.f32.mxu0 0.0
        %218 = vmatmul.mubr.f32.gmra.mrb[0].mxu0 %v151
        %v219 = vpop.f32.mrb[0].mxu0
        %v220 = vadd.f32 0.0, %v219
        %v221 = vpop.f32.mrb[0].mxu0
        %222 = vdwg.mxu0
        %v223 = vpack.c.bf16 %v220, %v220
        %v224 = vmul.f32 %v220, 0.125
        %v225 = vpack.c.bf16 %v224, %v224
        %227 = vrot.lane.b32.xlu0 %v225, 112
        %v228 = vpop.permute.xlu0 %227
        %vm229 = vcmask 130048
        %v231 = vsel %vm229, %v228, 0
        %v234 = vsel %vm229, %v223, 0
        %236 = vmatprep.subr.bf16.mxu0 0
        %237 = vmatpush1.bf16.xpose.msra.mxu0 %v234
        %238 = vmatprep.subr.bf16.mxu0 0
        %239 = vmatpush1.bf16.xpose.msra.mxu0 0
        %240 = vmatprep.subr.bf16.mxu0 0
        %241 = vmatpush1.bf16.xpose.msra.mxu0 0
        %242 = vmatprep.subr.bf16.mxu0 0
        %243 = vmatpush1.bf16.xpose.msra.mxu0 0
        %244 = vmatprep.subr.bf16.mxu0 0
        %245 = vmatpush1.bf16.xpose.msra.mxu0 0
        %246 = vmatprep.subr.bf16.mxu0 0
        %247 = vmatpush1.bf16.xpose.msra.mxu0 0
        %248 = vmatprep.subr.bf16.mxu0 0
        %249 = vmatpush1.bf16.xpose.msra.mxu0 0
        %250 = vmatprep.subr.bf16.mxu0 0
        %251 = vmatpush1.bf16.xpose.msra.mxu0 0
        %252 = vmatprep.subr.bf16.mxu0 0
        %253 = vmatpush1.bf16.xpose.msra.mxu0 0
        %254 = vmatprep.subr.bf16.mxu0 0
        %255 = vmatpush1.bf16.xpose.msra.mxu0 0
        %256 = vmatprep.subr.bf16.mxu0 0
        %257 = vmatpush1.bf16.xpose.msra.mxu0 0
        %258 = vmatprep.subr.bf16.mxu0 0
        %259 = vmatpush1.bf16.xpose.msra.mxu0 0
        %260 = vmatprep.subr.bf16.mxu0 0
        %261 = vmatpush1.bf16.xpose.msra.mxu0 0
        %262 = vmatprep.subr.bf16.mxu0 0
        %263 = vmatpush1.bf16.xpose.msra.mxu0 0
        %264 = vmatprep.subr.bf16.mxu0 0
        %265 = vmatpush1.bf16.xpose.msra.mxu0 0
        %266 = vmatprep.subr.bf16.mxu0 0
        %267 = vmatpush1.bf16.xpose.msra.mxu0 0
        %268 = vmatprep.mubr.bf16.mxu0 0
        %269 = vmatmul.mubr.bf16.gmra.mrb[0].mxu0 %v231
        %v270 = vpop.f32.mrb[0].mxu0
        %v271 = vadd.f32 0.0, %v270
        %v272 = vpop.f32.mrb[0].mxu0
        %v273 = vpop.f32.mrb[0].mxu0
        %v274 = vpop.f32.mrb[0].mxu0
        %275 = vdwg.mxu0
        %v276 = vlaneseq
        %v277 = vshrl.u32 %v276, 7
        %v278 = vlaneseq
        %v279 = vand.u32 %v278, 127
        %vm280 = vcmp.le.s32.totalorder %v279, %v277
        %v281 = vsel %vm280, %v271, -inf
        %vm282 = vcmask 64512
        %v283 = vsel %vm282, %v281, -inf
        %284 = vmax.xlane.f32.xlu0 %v283
        %v285 = vpop.xlane.xlu0 %284
        %v286 = vsub.f32 %v281, %v285
        %v287 = vmul.f32 %v286, 1.442695
        %v288 = vpow.pop %v287
        %v289 = vsel %vm282, %v288, 0.0
        %290 = vadd.xlane.f32.xlu0 %v289
        %v291 = vpop.xlane.xlu0 %290
        %v292 = vpack.c.bf16 %v288, %v288
        %294 = vrot.lane.b32.xlu0 %v223, 96
        %v295 = vpop.permute.xlu0 %294
        %v297 = vsel %vm282, %v292, 0
        %vm299 = vcmask 1043456
        %v301 = vsel %vm299, %v295, 0
        %303 = vmatprep.subr.bf16.mxu0 0
        %304 = vmatpush1.bf16.msra.mxu0 %v301
        %305 = vmatprep.subr.bf16.mxu0 0
        %306 = vmatpush1.bf16.msra.mxu0 0
        %307 = vmatprep.subr.bf16.mxu0 0
        %308 = vmatpush1.bf16.msra.mxu0 0
        %309 = vmatprep.subr.bf16.mxu0 0
        %310 = vmatpush1.bf16.msra.mxu0 0
        %311 = vmatprep.subr.bf16.mxu0 0
        %312 = vmatpush1.bf16.msra.mxu0 0
        %313 = vmatprep.subr.bf16.mxu0 0
        %314 = vmatpush1.bf16.msra.mxu0 0
        %315 = vmatprep.subr.bf16.mxu0 0
        %316 = vmatpush1.bf16.msra.mxu0 0
        %317 = vmatprep.subr.bf16.mxu0 0
        %318 = vmatpush1.bf16.msra.mxu0 0
        %319 = vmatprep.subr.bf16.mxu0 0
        %320 = vmatpush1.bf16.msra.mxu0 0
        %321 = vmatprep.subr.bf16.mxu0 0
        %322 = vmatpush1.bf16.msra.mxu0 0
        %323 = vmatprep.subr.bf16.mxu0 0
        %324 = vmatpush1.bf16.msra.mxu0 0
        %325 = vmatprep.subr.bf16.mxu0 0
        %326 = vmatpush1.bf16.msra.mxu0 0
        %327 = vmatprep.subr.bf16.mxu0 0
        %328 = vmatpush1.bf16.msra.mxu0 0
        %329 = vmatprep.subr.bf16.mxu0 0
        %330 = vmatpush1.bf16.msra.mxu0 0
        %331 = vmatprep.subr.bf16.mxu0 0
        %332 = vmatpush1.bf16.msra.mxu0 0
        %333 = vmatprep.subr.bf16.mxu0 0
        %334 = vmatpush1.bf16.msra.mxu0 0
        %335 = vmatprep.mubr.bf16.mxu0 0
        %336 = vmatmul.mubr.bf16.gmra.mrb[0].mxu0 %v297
        %v337 = vpop.f32.mrb[0].mxu0
        %v338 = vadd.f32 0.0, %v337
        %v339 = vpop.f32.mrb[0].mxu0
        %v340 = vpop.f32.mrb[0].mxu0
        %v341 = vpop.f32.mrb[0].mxu0
        %342 = vdwg.mxu0
        %v343 = vrcp.pop %v291
        %v344 = vmul.f32 %v338, %v343
        %345 = vst.msk [vmem:[%s134] sm:$0xff] %vm229, %v344
        %s346 = sand.u32 %s71, 1
        %s347 = scalar_lea.sflag [#allocation3], %s346
        %s348 = sand.u32 %s71, 1
        %s349 = smul.addr %s348, 8
        %s350 = scalar_lea.vmem [#allocation2], %s349
        // Predicated region
        $region29: #{tpu_custom_call.1} parent=27 // pred_check
          %p351 = pneg %p81
        $region30: #{tpu_custom_call.1} parent=27 // pred_check_branch
          %353 = sbr.rel (%p351) target = $region32
        $region31: #{tpu_custom_call.1} parent=27 // pred_region
          %s355 = ssub.s32 128, 128
          %356 = vsyncadd %s347, %s355
          %s357 = smul.addr %s16, 128
          %s358 = scalar_lea.hbm %s2, %s357
          %s360 = sshll.u32 %s350, 4
          %s361 = int_to_ptr.vmem [resolvable:$true] %s360
          %363 = dma.vmem_to_hbm [thread:$0]  %s361, 128, %s358, %s347
        $region32: #{tpu_custom_call.1} parent=27 // pred_fallthru
          _
      $region28: #{tpu_custom_call.1} parent=5 // pred_fallthru
        _
      %p364 = scmp.le.s32.totalorder 2, %s11
      // Predicated region
      $region33: #{tpu_custom_call.1} parent=5 // pred_check
        %p365 = pneg %p364
      $region34: #{tpu_custom_call.1} parent=5 // pred_check_branch
        %367 = sbr.rel (%p365) target = $region36
      $region35: #{tpu_custom_call.1} parent=5 // pred_region
        %s368 = ssub.s32 %s11, 2
        // Predicated region
        $region37: #{tpu_custom_call.1} parent=35 // pred_check
          %p369 = pneg %p87
        $region38: #{tpu_custom_call.1} parent=35 // pred_check_branch
          %371 = sbr.rel (%p369) target = $region40
        $region39: #{tpu_custom_call.1} parent=35 // pred_region
          %s372 = sand.u32 %s72, 1
          %s373 = scalar_lea.sflag [#allocation3], %s372
          %s374 = sand.u32 %s72, 1
          %s375 = smul.addr %s374, 8
          %s376 = scalar_lea.vmem [#allocation2], %s375
          %377 = dma.done %s373, 128
        $region40: #{tpu_custom_call.1} parent=35 // pred_fallthru
          _
      $region36: #{tpu_custom_call.1} parent=5 // pred_fallthru
        _
    $region6: #{tpu_custom_call.1} parent=1 // loop_footer
      %s15 = sadd.s32 1, %s11
    $region7: #{tpu_custom_call.1} parent=1 // loop_footer_branch
      %10 = sbr.rel target = $region3
    $region8: #{tpu_custom_call.1} parent=1 // loop_exit
      _
    %378 = vsyncpa [#allocation3], 1
    %s379 = scalar_lea.sflag [#allocation3], 1
    %380 = vsyncpa %s379, 1

</llo_original>
